<compile_context>
chip_gen: v5e
topology: v5e:2x2
jax: 0.10.0
libtpu: 0.0.40
codegen_flags: <defaults>
</compile_context>

<pallas_src>
import jax
import jax.numpy as jnp
from jax.experimental import pallas as pl
from jax.experimental.pallas import tpu as pltpu

_STATS_LANES = 128  # lane-dense stats output width


def _coreset_stats_kernel(nrows_ref, index_ref, data_ref, meanx_ref, cmeans_ref,
                          newmean_ref, stats_ref):
    """Fused per-tile reductions + running-mean update.

    Per grid step (one tile of TN rows), stats rows hold (lane-replicated):
      row 0    : min |data| over valid rows of this tile
      row 1    : max |data| over valid rows of this tile
      row 2    : sum((meanX_new - data)^2) over valid rows of this tile
      row 3+c  : sum_d (class_mean[c] - data)^2 over valid rows of this tile
    newmean block: (meanX * index + data) / (index + 1) for this tile.
    """
    i = pl.program_id(0)
    tn = data_ref.shape[0]
    n_classes = cmeans_ref.shape[0]
    srows = stats_ref.shape[0]

    data = data_ref[...]

    # Mask rows beyond the true (un-padded) batch size.
    row_ids = jax.lax.broadcasted_iota(jnp.int32, (tn, 1), 0) + i * tn
    valid = row_ids < nrows_ref[0]                                # (tn, 1) bool

    big = jnp.float32(jnp.finfo(jnp.float32).max)
    absd = jnp.abs(data)
    tile_min = jnp.min(jnp.where(valid, absd, big), keepdims=True)   # (1, 1)
    tile_max = jnp.max(jnp.where(valid, absd, 0.0), keepdims=True)   # (1, 1)

    # Running mean update: new_mean - data == idx/(idx+1) * (meanX - data).
    idx = index_ref[0]
    scale = idx / (idx + 1.0)
    delta = (meanx_ref[...] - data) * scale        # broadcasts (1,D) or (TN,D)
    newmean_ref[...] = data + delta
    dmask = jnp.where(valid, delta, 0.0)
    tile_sq = jnp.sum(dmask * dmask, keepdims=True)                  # (1, 1)

    # Per-class squared distance sum_{n,d} (cm[c,d] - data[n,d])^2 (direct form
    # for numerical safety; C is tiny so this is free under the memory-bound pass).
    tile_cd = []
    for c in range(n_classes):
        cm = cmeans_ref[pl.ds(c, 1), :]                              # (1, D)
        dc = jnp.where(valid, data - cm, 0.0)
        tile_cd.append(jnp.sum(dc * dc, keepdims=True))              # (1, 1)

    # Pack all scalars into one lane-dense (srows, 128) block (single store/DMA).
    ridx = jax.lax.broadcasted_iota(jnp.int32, (srows, _STATS_LANES), 0)
    stats = jnp.zeros((srows, _STATS_LANES), jnp.float32)
    stats = jnp.where(ridx == 0, tile_min, stats)
    stats = jnp.where(ridx == 1, tile_max, stats)
    stats = jnp.where(ridx == 2, tile_sq, stats)
    for c in range(n_classes):
        stats = jnp.where(ridx == 3 + c, tile_cd[c], stats)
    stats_ref[...] = stats


def _round_up(x, m):
    return ((x + m - 1) // m) * m


def _choose_tile_rows(n_rows, dim):
    # Keep (data + meanX + newmean) per step around ~4 MiB (Pallas double-buffers),
    # comfortably inside v5e's 16 MiB / v7x's 32 MiB scoped-VMEM defaults.
    budget_bytes = 4 * 1024 * 1024
    per_row = 3 * dim * 4
    tn = max(8, min(1024, budget_bytes // max(per_row, 1)))
    tn = max(8, (tn // 8) * 8)
    return min(tn, _round_up(n_rows, 8))


@jax.jit
def coreset_stats(index_f32, data, meanx, cmeans):
    """One fused pass over (N, D) data; returns updated meanX and all scalars."""
    n, d = data.shape
    c = cmeans.shape[0]
    tn = _choose_tile_rows(n, d)
    n_pad = _round_up(n, tn)
    num_tiles = n_pad // tn
    srows = _round_up(3 + c, 8)

    data_p = jnp.pad(data, ((0, n_pad - n), (0, 0))) if n_pad != n else data
    if meanx.shape[0] == 1:
        meanx_p = meanx
        mean_spec = pl.BlockSpec((1, d), lambda i: (0, 0))
    else:
        meanx_p = (jnp.pad(meanx, ((0, n_pad - n), (0, 0)))
                   if n_pad != n else meanx)
        mean_spec = pl.BlockSpec((tn, d), lambda i: (i, 0))

    nrows_i32 = jnp.array([n], jnp.int32)
    idx_arr = jnp.reshape(index_f32, (1,)).astype(jnp.float32)

    newmean_p, stats = pl.pallas_call(
        _coreset_stats_kernel,
        out_shape=(
            jax.ShapeDtypeStruct((n_pad, d), jnp.float32),
            jax.ShapeDtypeStruct((num_tiles * srows, _STATS_LANES), jnp.float32),
        ),
        grid=(num_tiles,),
        in_specs=[
            pl.BlockSpec(memory_space=pltpu.SMEM),        # n valid rows (int32)
            pl.BlockSpec(memory_space=pltpu.SMEM),        # stream index (f32)
            pl.BlockSpec((tn, d), lambda i: (i, 0)),      # data tile
            mean_spec,                                    # meanX (1,D) or (N,D)
            pl.BlockSpec((c, d), lambda i: (0, 0)),       # class means
        ],
        out_specs=(
            pl.BlockSpec((tn, d), lambda i: (i, 0)),                  # new meanX
            pl.BlockSpec((srows, _STATS_LANES), lambda i: (i, 0)),    # per-tile stats
        ),
        compiler_params=pltpu.CompilerParams(
            dimension_semantics=("parallel",)),
    )(nrows_i32, idx_arr, data_p, meanx_p, cmeans)

    # Tiny cross-tile combine (num_tiles values each).
    s = stats.reshape(num_tiles, srows, _STATS_LANES)[:, :, 0]
    minabs = jnp.min(s[:, 0])
    maxabs = jnp.max(s[:, 1])
    sqsum = jnp.sum(s[:, 2])
    cdist_sq = jnp.sum(s[:, 3:3 + c], axis=0)           # (C,)
    return newmean_p[:n], minabs, maxabs, sqsum, cdist_sq


class ParametricFilterPallas:
    """JAX/Pallas port of ParamertricFilter; the Pallas kernel does the reductions."""

    def __init__(self, k, epsilon, dim=1, classes=2, seed=0):
        self.k = k
        self.dim = dim
        self.classes = classes
        self.lmbda = jnp.float32(jnp.inf)
        self.nu = jnp.float32(0.0)
        self.mu = jnp.float32(0.0)
        self.index = 0
        self.meanX = jnp.zeros((1, dim), jnp.float32)
        self.sensitivity = jnp.float32(0.0)
        self.epsilon = epsilon
        self.completeCoresetIndexs = []
        # TODO(synk): dynamic per-class element-list growth (data-dependent
        # shapes) has no clean fixed-shape Pallas equivalent; kept as host/JAX state.
        self.elements = [jnp.zeros((0, dim), jnp.float32) for _ in range(classes)]
        self.meanPerClass = jnp.zeros((classes,), jnp.float32)
        self.sdPerClass = jnp.zeros((classes,), jnp.float32)
        self.p = jnp.float32(1.0)
        self._rng = jax.random.PRNGKey(seed + 1234)

    def forward(self, data, labels):
        data = jnp.reshape(data, (-1, self.dim)).astype(jnp.float32)
        labels = jnp.reshape(labels, (-1, self.classes))

        # Per-class means (zeros when a class has no elements yet), as in the reference.
        cmeans = jnp.stack([
            jnp.zeros((self.dim,), jnp.float32) if self.elements[i].shape[0] == 0
            else jnp.mean(self.elements[i], axis=0)
            for i in range(self.classes)
        ], axis=0)

        new_meanx, minabs, maxabs, sqsum, cdist_sq = coreset_stats(
            jnp.float32(self.index), data, self.meanX, cmeans)

        # Scalar stream statistics (same update order as the torch reference).
        self.lmbda = jnp.minimum(self.lmbda, minabs)
        self.nu = jnp.maximum(self.nu, maxabs)
        self.mu = self.lmbda / self.nu
        # NOTE: like the torch code, meanX becomes (N, dim) via broadcasting.
        self.meanX = new_meanx
        MDdist = jnp.exp(self.nu) / 2.0 * sqsum
        self.sensitivity = self.sensitivity + MDdist
        if self.index == 0:
            self.p = jnp.float32(1.0)
        else:
            self.p = jnp.minimum(
                jnp.float32(1.0),
                2.0 * self.epsilon * MDdist / (self.sensitivity * self.mu)
                + 8.0 * self.epsilon / (self.index * self.mu))
        self.index = self.index + 1

        self._rng, sub = jax.random.split(self._rng)
        u = jax.random.uniform(sub, ())

        # Single device->host sync for all data-dependent control flow this step.
        thresholds = self.meanPerClass + self.k * self.sdPerClass
        u_h, p_h, lbl_h, dist_h, thr_h = jax.device_get(
            (u, self.p, labels[0], jnp.sqrt(cdist_sq), thresholds))

        if float(u_h) < float(p_h):
            valid = 0
            last_class_mean = jnp.zeros((self.dim,), jnp.float32)
            for i in range(labels.shape[1]):
                if float(lbl_h[i]) == 1.0:
                    last_class_mean = cmeans[i]
                    if float(dist_h[i]) >= float(thr_h[i]):
                        valid = 1
            if valid == 1:
                for i in range(labels.shape[1]):
                    if float(lbl_h[i]) == 1.0:
                        # TODO(synk): element list grows per accept (shape change ->
                        # retrace); no fixed-shape Pallas equivalent for this growth.
                        self.elements[i] = jnp.concatenate(
                            [self.elements[i], data], axis=0)
                        # Replicate the reference's reuse of the last `class_mean`
                        # set in the loop above.
                        diffs = self.elements[i] - last_class_mean[None, :]
                        dmat = jnp.sqrt(jnp.sum(diffs * diffs, axis=1))
                        n_el = dmat.shape[0]
                        m = jnp.sum(dmat) / n_el
                        self.meanPerClass = self.meanPerClass.at[i].set(m)
                        sd = jnp.sum((dmat - m) ** 2) / (n_el ** 0.5)
                        self.sdPerClass = self.sdPerClass.at[i].set(sd)
                self.completeCoresetIndexs += [self.index - 1]
                return self.completeCoresetIndexs
            else:
                return 0
        return None  # reference forward falls off the end when sample rejected


if __name__ == "__main__":
    key = jax.random.PRNGKey(0)
    dim, classes, n_rows = 128, 2, 8
    filt = ParametricFilterPallas(k=1.0, epsilon=0.1, dim=dim,
                                  classes=classes, seed=0)

    for step in range(3):
        key, kd, kl = jax.random.split(key, 3)
        data = jax.random.normal(kd, (n_rows, dim), jnp.float32)
        lbl_idx = jax.random.randint(kl, (n_rows,), 0, classes)
        labels = jax.nn.one_hot(lbl_idx, classes, dtype=jnp.float32)
        _ = filt.forward(data, labels)

    jax.block_until_ready((filt.meanX, filt.sensitivity,
                           filt.meanPerClass, filt.sdPerClass))
    print("KERNEL_OK")
</pallas_src>

<mosaic_0001>
module attributes {stable_mosaic.version = 11 : i64} {
  func.func @_coreset_stats_kernel(%arg0: i32, %arg1: memref<1xi32, #tpu.memory_space<smem>>, %arg2: memref<1xf32, #tpu.memory_space<smem>>, %arg3: memref<8x128xf32, #tpu.memory_space<vmem>>, %arg4: memref<1x128xf32, #tpu.memory_space<vmem>>, %arg5: memref<2x128xf32, #tpu.memory_space<vmem>>, %arg6: memref<8x128xf32, #tpu.memory_space<vmem>>, %arg7: memref<8x128xf32, #tpu.memory_space<vmem>>) attributes {dimension_semantics = [#tpu.dimension_semantics<parallel>], iteration_bounds = array<i64: 1>, scalar_prefetch = 0 : i64, scratch_operands = 0 : i64, tpu.core_type = #tpu.core_type<tc>, window_params = [{transform_indices = @transform_0, window_bounds = array<i64: 1>}, {transform_indices = @transform_1, window_bounds = array<i64: 1>}, {transform_indices = @transform_2, window_bounds = array<i64: 8, 128>}, {pipeline_mode = #tpu.pipeline_mode<synchronous>, transform_indices = @transform_3, window_bounds = array<i64: 1, 128>}, {pipeline_mode = #tpu.pipeline_mode<synchronous>, transform_indices = @transform_4, window_bounds = array<i64: 2, 128>}, {transform_indices = @transform_5, window_bounds = array<i64: 8, 128>}, {transform_indices = @transform_6, window_bounds = array<i64: 8, 128>}]} {
    %c0 = arith.constant 0 : index
    %c0_0 = arith.constant 0 : index
    %0 = vector.load %arg3[%c0, %c0_0] : memref<8x128xf32, #tpu.memory_space<vmem>>, vector<8x128xf32>
    %1 = tpu.iota {dimensions = array<i32: 0>} : vector<8x1xi32>
    %c8_i32 = arith.constant 8 : i32
    %2 = arith.muli %arg0, %c8_i32 : i32
    %3 = vector.broadcast %2 : i32 to vector<8x1xi32>
    %4 = arith.addi %1, %3 : vector<8x1xi32>
    %c0_1 = arith.constant 0 : index
    %5 = memref.load %arg1[%c0_1] : memref<1xi32, #tpu.memory_space<smem>>
    %6 = vector.broadcast %5 : i32 to vector<8x1xi32>
    %7 = arith.cmpi slt, %4, %6 : vector<8x1xi32>
    %8 = math.absf %0 : vector<8x128xf32>
    %cst = arith.constant 3.40282347E+38 : f32
    %9 = vector.shape_cast %7 : vector<8x1xi1> to vector<8x1xi1>
    %10 = vector.broadcast %9 : vector<8x1xi1> to vector<8x128xi1>
    %11 = vector.broadcast %cst : f32 to vector<8x128xf32>
    %12 = arith.select %10, %8, %11 : vector<8x128xi1>, vector<8x128xf32>
    %13 = vector.shape_cast %12 : vector<8x128xf32> to vector<1x8x128xf32>
    %cst_2 = arith.constant dense<0x7F800000> : vector<1xf32>
    %14 = vector.multi_reduction <minimumf>, %13, %cst_2 [1, 2] : vector<1x8x128xf32> to vector<1xf32>
    %15 = vector.shape_cast %14 : vector<1xf32> to vector<1x1x1xf32>
    %16 = vector.extract %15[0, 0, 0] : f32 from vector<1x1x1xf32>
    %17 = vector.broadcast %16 : f32 to vector<1x1xf32>
    %cst_3 = arith.constant 0.000000e+00 : f32
    %18 = vector.shape_cast %7 : vector<8x1xi1> to vector<8x1xi1>
    %19 = vector.broadcast %18 : vector<8x1xi1> to vector<8x128xi1>
    %20 = vector.broadcast %cst_3 : f32 to vector<8x128xf32>
    %21 = arith.select %19, %8, %20 : vector<8x128xi1>, vector<8x128xf32>
    %22 = vector.shape_cast %21 : vector<8x128xf32> to vector<1x8x128xf32>
    %cst_4 = arith.constant dense<0xFF800000> : vector<1xf32>
    %23 = vector.multi_reduction <maximumf>, %22, %cst_4 [1, 2] : vector<1x8x128xf32> to vector<1xf32>
    %24 = vector.shape_cast %23 : vector<1xf32> to vector<1x1x1xf32>
    %25 = vector.extract %24[0, 0, 0] : f32 from vector<1x1x1xf32>
    %26 = vector.broadcast %25 : f32 to vector<1x1xf32>
    %c0_5 = arith.constant 0 : index
    %27 = memref.load %arg2[%c0_5] : memref<1xf32, #tpu.memory_space<smem>>
    %cst_6 = arith.constant 1.000000e+00 : f32
    %28 = arith.addf %27, %cst_6 : f32
    %29 = arith.divf %27, %28 : f32
    %c0_7 = arith.constant 0 : index
    %c0_8 = arith.constant 0 : index
    %30 = vector.load %arg4[%c0_7, %c0_8] : memref<1x128xf32, #tpu.memory_space<vmem>>, vector<1x128xf32>
    %31 = vector.broadcast %30 : vector<1x128xf32> to vector<8x128xf32>
    %32 = arith.subf %31, %0 : vector<8x128xf32>
    %33 = vector.broadcast %29 : f32 to vector<8x128xf32>
    %34 = arith.mulf %32, %33 : vector<8x128xf32>
    %35 = arith.addf %0, %34 : vector<8x128xf32>
    %c0_9 = arith.constant 0 : index
    %c0_10 = arith.constant 0 : index
    %36 = vector.load %arg6[%c0_9, %c0_10] : memref<8x128xf32, #tpu.memory_space<vmem>>, vector<8x128xf32>
    tpu.vector_store %arg6[%c0_9, %c0_10], %35 {strides = array<i32>} : memref<8x128xf32, #tpu.memory_space<vmem>>, vector<8x128xf32>,
    %cst_11 = arith.constant 0.000000e+00 : f32
    %37 = vector.shape_cast %7 : vector<8x1xi1> to vector<8x1xi1>
    %38 = vector.broadcast %37 : vector<8x1xi1> to vector<8x128xi1>
    %39 = vector.broadcast %cst_11 : f32 to vector<8x128xf32>
    %40 = arith.select %38, %34, %39 : vector<8x128xi1>, vector<8x128xf32>
    %41 = arith.mulf %40, %40 : vector<8x128xf32>
    %42 = vector.shape_cast %41 : vector<8x128xf32> to vector<1x8x128xf32>
    %cst_12 = arith.constant dense<0.000000e+00> : vector<1xf32>
    %43 = vector.multi_reduction <add>, %42, %cst_12 [1, 2] : vector<1x8x128xf32> to vector<1xf32>
    %44 = vector.shape_cast %43 : vector<1xf32> to vector<1x1x1xf32>
    %45 = vector.extract %44[0, 0, 0] : f32 from vector<1x1x1xf32>
    %46 = vector.broadcast %45 : f32 to vector<1x1xf32>
    %c0_13 = arith.constant 0 : index
    %c0_14 = arith.constant 0 : index
    %47 = vector.load %arg5[%c0_13, %c0_14] : memref<2x128xf32, #tpu.memory_space<vmem>>, vector<1x128xf32>
    %48 = vector.broadcast %47 : vector<1x128xf32> to vector<8x128xf32>
    %49 = arith.subf %0, %48 : vector<8x128xf32>
    %cst_15 = arith.constant 0.000000e+00 : f32
    %50 = vector.shape_cast %7 : vector<8x1xi1> to vector<8x1xi1>
    %51 = vector.broadcast %50 : vector<8x1xi1> to vector<8x128xi1>
    %52 = vector.broadcast %cst_15 : f32 to vector<8x128xf32>
    %53 = arith.select %51, %49, %52 : vector<8x128xi1>, vector<8x128xf32>
    %54 = arith.mulf %53, %53 : vector<8x128xf32>
    %55 = vector.shape_cast %54 : vector<8x128xf32> to vector<1x8x128xf32>
    %cst_16 = arith.constant dense<0.000000e+00> : vector<1xf32>
    %56 = vector.multi_reduction <add>, %55, %cst_16 [1, 2] : vector<1x8x128xf32> to vector<1xf32>
    %57 = vector.shape_cast %56 : vector<1xf32> to vector<1x1x1xf32>
    %58 = vector.extract %57[0, 0, 0] : f32 from vector<1x1x1xf32>
    %59 = vector.broadcast %58 : f32 to vector<1x1xf32>
    %c1 = arith.constant 1 : index
    %c0_17 = arith.constant 0 : index
    %60 = vector.load %arg5[%c1, %c0_17] : memref<2x128xf32, #tpu.memory_space<vmem>>, vector<1x128xf32>
    %61 = vector.broadcast %60 : vector<1x128xf32> to vector<8x128xf32>
    %62 = arith.subf %0, %61 : vector<8x128xf32>
    %cst_18 = arith.constant 0.000000e+00 : f32
    %63 = vector.shape_cast %7 : vector<8x1xi1> to vector<8x1xi1>
    %64 = vector.broadcast %63 : vector<8x1xi1> to vector<8x128xi1>
    %65 = vector.broadcast %cst_18 : f32 to vector<8x128xf32>
    %66 = arith.select %64, %62, %65 : vector<8x128xi1>, vector<8x128xf32>
    %67 = arith.mulf %66, %66 : vector<8x128xf32>
    %68 = vector.shape_cast %67 : vector<8x128xf32> to vector<1x8x128xf32>
    %cst_19 = arith.constant dense<0.000000e+00> : vector<1xf32>
    %69 = vector.multi_reduction <add>, %68, %cst_19 [1, 2] : vector<1x8x128xf32> to vector<1xf32>
    %70 = vector.shape_cast %69 : vector<1xf32> to vector<1x1x1xf32>
    %71 = vector.extract %70[0, 0, 0] : f32 from vector<1x1x1xf32>
    %72 = vector.broadcast %71 : f32 to vector<1x1xf32>
    %73 = tpu.iota {dimensions = array<i32: 0>} : vector<8x128xi32>
    %cst_20 = arith.constant 0.000000e+00 : f32
    %74 = vector.broadcast %cst_20 : f32 to vector<8x128xf32>
    %c0_i32 = arith.constant 0 : i32
    %75 = vector.broadcast %c0_i32 : i32 to vector<8x128xi32>
    %76 = arith.cmpi eq, %73, %75 : vector<8x128xi32>
    %77 = vector.shape_cast %17 : vector<1x1xf32> to vector<1x1xf32>
    %78 = vector.broadcast %77 : vector<1x1xf32> to vector<8x128xf32>
    %79 = arith.select %76, %78, %74 : vector<8x128xi1>, vector<8x128xf32>
    %c1_i32 = arith.constant 1 : i32
    %80 = vector.broadcast %c1_i32 : i32 to vector<8x128xi32>
    %81 = arith.cmpi eq, %73, %80 : vector<8x128xi32>
    %82 = vector.shape_cast %26 : vector<1x1xf32> to vector<1x1xf32>
    %83 = vector.broadcast %82 : vector<1x1xf32> to vector<8x128xf32>
    %84 = arith.select %81, %83, %79 : vector<8x128xi1>, vector<8x128xf32>
    %c2_i32 = arith.constant 2 : i32
    %85 = vector.broadcast %c2_i32 : i32 to vector<8x128xi32>
    %86 = arith.cmpi eq, %73, %85 : vector<8x128xi32>
    %87 = vector.shape_cast %46 : vector<1x1xf32> to vector<1x1xf32>
    %88 = vector.broadcast %87 : vector<1x1xf32> to vector<8x128xf32>
    %89 = arith.select %86, %88, %84 : vector<8x128xi1>, vector<8x128xf32>
    %c3_i32 = arith.constant 3 : i32
    %90 = vector.broadcast %c3_i32 : i32 to vector<8x128xi32>
    %91 = arith.cmpi eq, %73, %90 : vector<8x128xi32>
    %92 = vector.shape_cast %59 : vector<1x1xf32> to vector<1x1xf32>
    %93 = vector.broadcast %92 : vector<1x1xf32> to vector<8x128xf32>
    %94 = arith.select %91, %93, %89 : vector<8x128xi1>, vector<8x128xf32>
    %c4_i32 = arith.constant 4 : i32
    %95 = vector.broadcast %c4_i32 : i32 to vector<8x128xi32>
    %96 = arith.cmpi eq, %73, %95 : vector<8x128xi32>
    %97 = vector.shape_cast %72 : vector<1x1xf32> to vector<1x1xf32>
    %98 = vector.broadcast %97 : vector<1x1xf32> to vector<8x128xf32>
    %99 = arith.select %96, %98, %94 : vector<8x128xi1>, vector<8x128xf32>
    %c0_21 = arith.constant 0 : index
    %c0_22 = arith.constant 0 : index
    %100 = vector.load %arg7[%c0_21, %c0_22] : memref<8x128xf32, #tpu.memory_space<vmem>>, vector<8x128xf32>
    tpu.vector_store %arg7[%c0_21, %c0_22], %99 {strides = array<i32>} : memref<8x128xf32, #tpu.memory_space<vmem>>, vector<8x128xf32>,
    return
  }
  func.func @transform_0(%arg0: i32) -> i32 {
    %c0_i32 = arith.constant 0 : i32
    %c0_i32_0 = arith.constant 0 : i32
    return %c0_i32 : i32
  }
  func.func @transform_1(%arg0: i32) -> i32 {
    %c0_i32 = arith.constant 0 : i32
    %c0_i32_0 = arith.constant 0 : i32
    return %c0_i32 : i32
  }
  func.func @transform_2(%arg0: i32) -> (i32, i32) {
    %c0_i32 = arith.constant 0 : i32
    %c0_i32_0 = arith.constant 0 : i32
    return %arg0, %c0_i32 : i32, i32
  }
  func.func @transform_3(%arg0: i32) -> (i32, i32) {
    %c0_i32 = arith.constant 0 : i32
    %c0_i32_0 = arith.constant 0 : i32
    %c0_i32_1 = arith.constant 0 : i32
    return %c0_i32, %c0_i32_0 : i32, i32
  }
  func.func @transform_4(%arg0: i32) -> (i32, i32) {
    %c0_i32 = arith.constant 0 : i32
    %c0_i32_0 = arith.constant 0 : i32
    %c0_i32_1 = arith.constant 0 : i32
    return %c0_i32, %c0_i32_0 : i32, i32
  }
  func.func @transform_5(%arg0: i32) -> (i32, i32) {
    %c0_i32 = arith.constant 0 : i32
    %c0_i32_0 = arith.constant 0 : i32
    return %arg0, %c0_i32 : i32, i32
  }
  func.func @transform_6(%arg0: i32) -> (i32, i32) {
    %c0_i32 = arith.constant 0 : i32
    %c0_i32_0 = arith.constant 0 : i32
    return %arg0, %c0_i32 : i32, i32
  }
}

</mosaic_0001>

<llo_original>
// kernel: coreset_stats.1
$region0: #{coreset_stats.1}
  #allocation0 [shape = 'u32[]', space=smem, size = 0x4, offset = 0x4, fixed_abs, tag = 'smem constant byte address 0x4 - core index']
  #allocation1 [shape = 'u32[72,128]{1,0:T(1,128)}', space=vmem, size = 0x9000, scoped, tag = 'internal scratch']
  #allocation2 [shape = 's32[1]{0:T(128)S(6)}', space=smem, size = 0x200, scoped, tag = 'scoped memory for coreset_stats.1']
  #allocation3 [shape = 'f32[1]{0:T(128)S(6)}', space=smem, size = 0x200, scoped, tag = 'scoped memory for coreset_stats.1']
  %s0 = inlined_call_operand.<no memory space> [shape: s32[1], index: 0, kind: input, shape index: {}]
  %s1 = inlined_call_operand.<no memory space> [shape: f32[1], index: 1, kind: input, shape index: {}]
  %s2 = inlined_call_operand.hbm [shape: f32[8,128], index: 2, kind: input, shape index: {}]
  %s3 = inlined_call_operand.vmem [shape: f32[1,128], index: 3, kind: input, shape index: {}]
  %s4 = inlined_call_operand.vmem [shape: f32[2,128], index: 4, kind: input, shape index: {}]
  %s5 = inlined_call_operand.hbm [shape: f32[8,128], index: 5, kind: output, shape index: {0}]
  %s6 = inlined_call_operand.vmem [shape: f32[8,128], index: 6, kind: output, shape index: {1}]
  %7 = xla_tuple %s5, %s6
  %s8 = sld [smem:[#allocation0]]
  $region42: #{coreset_stats.1} parent=0
    _
  %s10 = ssub.s32 1, %s8
  %s11 = scalar_select 0, %s10, %s8
  %12 = sst [smem:[#allocation2]] %s0
  %13 = sst [smem:[#allocation3]] %s1
  $region1: #{coreset_stats.1} parent=0
    #allocation4 [shape = 'u8[4096]{0}', space=vmem, size = 0x1000, scoped, tag = 'input window, operand 2, single buffered']
    #allocation5 [shape = 's32[1]{0}', space=sflag, size = 0x4, scoped, tag = 'scoped memory for coreset_stats.1']
    #allocation6 [shape = 's32[1]{0}', space=sflag, size = 0x4, scoped, tag = 'scoped memory for coreset_stats.1']
    #allocation7 [shape = 'u8[4096]{0}', space=vmem, size = 0x1000, scoped, tag = 'output window, operand 0, single buffered']
    %14 = vsyncpa [#allocation5], 0
    %15 = vsyncpa [#allocation6], 0
    // Predicated region
    $region2: #{coreset_stats.1} parent=1 // pred_check
      _
    $region3: #{coreset_stats.1} parent=1 // pred_check_branch
      %17 = sbr.rel (0) target = $region5
    $region4: #{coreset_stats.1} parent=1 // pred_region
      _
    $region5: #{coreset_stats.1} parent=1 // pred_fallthru
      _
    // Predicated region
    $region6: #{coreset_stats.1} parent=1 // pred_check
      _
    $region7: #{coreset_stats.1} parent=1 // pred_check_branch
      %19 = sbr.rel (0) target = $region9
    $region8: #{coreset_stats.1} parent=1 // pred_region
      _
    $region9: #{coreset_stats.1} parent=1 // pred_fallthru
      _
    // Predicated region
    $region10: #{coreset_stats.1} parent=1 // pred_check
      _
    $region11: #{coreset_stats.1} parent=1 // pred_check_branch
      %21 = sbr.rel (0) target = $region13
    $region12: #{coreset_stats.1} parent=1 // pred_region
      %23 = vsyncadd [#allocation5], 0
      %s25 = sshll.u32 %s2, 4
      %s26 = int_to_ptr.hbm [resolvable:$true] %s25
      %s27 = sshll.u32 [#allocation4], 4
      %s28 = int_to_ptr.vmem [resolvable:$true] %s27
      %30 = dma.hbm_to_vmem [thread:$0]  %s26, 128, %s28, [#allocation5]
    $region13: #{coreset_stats.1} parent=1 // pred_fallthru
      _
    // Predicated region
    $region14: #{coreset_stats.1} parent=1 // pred_check
      _
    $region15: #{coreset_stats.1} parent=1 // pred_check_branch
      %32 = sbr.rel (0) target = $region17
    $region16: #{coreset_stats.1} parent=1 // pred_region
      _
    $region17: #{coreset_stats.1} parent=1 // pred_fallthru
      _
    // Predicated region
    $region18: #{coreset_stats.1} parent=1 // pred_check
      _
    $region19: #{coreset_stats.1} parent=1 // pred_check_branch
      %34 = sbr.rel (0) target = $region21
    $region20: #{coreset_stats.1} parent=1 // pred_region
      _
    $region21: #{coreset_stats.1} parent=1 // pred_fallthru
      _
    // Predicated region
    $region22: #{coreset_stats.1} parent=1 // pred_check
      _
    $region23: #{coreset_stats.1} parent=1 // pred_check_branch
      %36 = sbr.rel (0) target = $region25
    $region24: #{coreset_stats.1} parent=1 // pred_region
      %38 = dma.done [#allocation5], 128
    $region25: #{coreset_stats.1} parent=1 // pred_fallthru
      _
    %v39 = vld [vmem:[#allocation4] sm:$0xff]
    %v40 = vlaneseq
    %v41 = vshrl.u32 %v40, 7
    %s42 = smul.u32 0, 8
    %v43 = vstv %s42
    %v44 = vadd.s32 %v41, %v43
    %s45 = sld [smem:[#allocation2]]
    %v46 = vstv %s45
    %vm47 = vcmp.lt.s32.totalorder %v44, %v46
    %v48 = vand.u32 2147483647, %v39
    %v49 = vsel %vm47, 1, 0
    %vm50 = vcmp.eq.s32.totalorder %v49, 1
    %v51 = vsel %vm50, %v48, 3.4028235e+38
    %52 = vmin.xlane.f32.xlu0 %v51
    %v53 = vpop.xlane.xlu0 %52
    %v54 = vrot.slane %v53, 4
    %v55 = vmin.f32 %v53, %v54
    %v56 = vrot.slane %v55, 2
    %v57 = vmin.f32 %v55, %v56
    %v58 = vrot.slane %v57, 1
    %v59 = vmin.f32 %v57, %v58
    %s60 = vtos %v59
    %v61 = vsel %vm50, %v48, 0.0
    %62 = vmax.xlane.f32.xlu0 %v61
    %v63 = vpop.xlane.xlu0 %62
    %v64 = vrot.slane %v63, 4
    %v65 = vmax.f32 %v63, %v64
    %v66 = vrot.slane %v65, 2
    %v67 = vmax.f32 %v65, %v66
    %v68 = vrot.slane %v67, 1
    %v69 = vmax.f32 %v67, %v68
    %s70 = vtos %v69
    %s71 = sld [smem:[#allocation3]]
    %s72 = sadd.f32 %s71, 1.0
    %v73 = vstv %s72
    %v74 = vrcp.pop %v73
    %v75 = vmul.f32 %v73, %v74
    %v76 = vsub.f32 1.0, %v75
    %v77 = vmul.f32 %v74, %v76
    %v78 = vadd.f32 %v74, %v77
    %vm79 = vweird.f32 %v73
    %vm80 = vweird.f32 %v74
    %vm81 = vmor %vm79, %vm80
    %v82 = vsel %vm81, %v74, %v78
    %v83 = vand.u32 2147483647, %v73
    %vm84 = vcmp.eq.f32.partialorder %v83, 8.507059e+37
    %v85 = vand.u32 %v73, 2147483648
    %v86 = vor.u32 1.1754944e-38, %v85
    %v87 = vsel %vm84, %v86, %v82
    %s88 = vtos %v87
    %s89 = smul.f32 %s71, %s88
    %v90 = vld [vmem:[%s3] sm:$0x1]
    %v92 = vperm.slane %v90, 0
    %v94 = vsub.f32 %v92, %v39
    %v95 = vstv %s89
    %v96 = vmul.f32 %v94, %v95
    %v97 = vadd.f32 %v39, %v96
    %98 = vst [vmem:[#allocation7] sm:$0xff] %v97
    %v99 = vsel %vm50, %v96, 0.0
    %v100 = vmul.f32 %v99, %v99
    %101 = vadd.xlane.f32.xlu0 %v100
    %v102 = vpop.xlane.xlu0 %101
    %v103 = vrot.slane %v102, 4
    %v104 = vadd.f32 %v102, %v103
    %v105 = vrot.slane %v104, 2
    %v106 = vadd.f32 %v104, %v105
    %v107 = vrot.slane %v106, 1
    %v108 = vadd.f32 %v106, %v107
    %s109 = vtos %v108
    %v110 = vld [vmem:[%s4] sm:$0x1]
    %v111 = vperm.slane %v110, 0
    %v112 = vsub.f32 %v39, %v111
    %v113 = vsel %vm50, %v112, 0.0
    %v114 = vmul.f32 %v113, %v113
    %115 = vadd.xlane.f32.xlu0 %v114
    %v116 = vpop.xlane.xlu0 %115
    %v117 = vrot.slane %v116, 4
    %v118 = vadd.f32 %v116, %v117
    %v119 = vrot.slane %v118, 2
    %v120 = vadd.f32 %v118, %v119
    %v121 = vrot.slane %v120, 1
    %v122 = vadd.f32 %v120, %v121
    %s123 = vtos %v122
    %v124 = vld [vmem:[%s4 + $0x1] sm:$0x1]
    %v125 = vperm.slane %v124, 0
    %v126 = vsub.f32 %v39, %v125
    %v127 = vsel %vm50, %v126, 0.0
    %v128 = vmul.f32 %v127, %v127
    %129 = vadd.xlane.f32.xlu0 %v128
    %v130 = vpop.xlane.xlu0 %129
    %v131 = vrot.slane %v130, 4
    %v132 = vadd.f32 %v130, %v131
    %v133 = vrot.slane %v132, 2
    %v134 = vadd.f32 %v132, %v133
    %v135 = vrot.slane %v134, 1
    %v136 = vadd.f32 %v134, %v135
    %s137 = vtos %v136
    %vm138 = vcmp.eq.s32.totalorder %v41, 0
    %v139 = vstv %s60
    %v140 = vsel %vm138, %v139, 0.0
    %vm141 = vcmp.eq.s32.totalorder %v41, 1
    %v142 = vstv %s70
    %v143 = vsel %vm141, %v142, %v140
    %vm144 = vcmp.eq.s32.totalorder %v41, 2
    %v145 = vstv %s109
    %v146 = vsel %vm144, %v145, %v143
    %vm147 = vcmp.eq.s32.totalorder %v41, 3
    %v148 = vstv %s123
    %v149 = vsel %vm147, %v148, %v146
    %vm150 = vcmp.eq.s32.totalorder %v41, 4
    %v151 = vstv %s137
    %v152 = vsel %vm150, %v151, %v149
    %153 = vst [vmem:[%s6] sm:$0xff] %v152
    // Predicated region
    $region26: #{coreset_stats.1} parent=1 // pred_check
      _
    $region27: #{coreset_stats.1} parent=1 // pred_check_branch
      %155 = sbr.rel (0) target = $region29
    $region28: #{coreset_stats.1} parent=1 // pred_region
      %157 = vsyncadd [#allocation6], 0
      %s159 = sshll.u32 [#allocation7], 4
      %s160 = int_to_ptr.vmem [resolvable:$true] %s159
      %s161 = sshll.u32 %s5, 4
      %s162 = int_to_ptr.hbm [resolvable:$true] %s161
      %164 = dma.vmem_to_hbm [thread:$0]  %s160, 128, %s162, [#allocation6]
    $region29: #{coreset_stats.1} parent=1 // pred_fallthru
      _
    // Predicated region
    $region30: #{coreset_stats.1} parent=1 // pred_check
      _
    $region31: #{coreset_stats.1} parent=1 // pred_check_branch
      %166 = sbr.rel (0) target = $region33
    $region32: #{coreset_stats.1} parent=1 // pred_region
      _
    $region33: #{coreset_stats.1} parent=1 // pred_fallthru
      _
    // Predicated region
    $region34: #{coreset_stats.1} parent=1 // pred_check
      _
    $region35: #{coreset_stats.1} parent=1 // pred_check_branch
      %168 = sbr.rel (0) target = $region37
    $region36: #{coreset_stats.1} parent=1 // pred_region
      %170 = dma.done [#allocation6], 128
    $region37: #{coreset_stats.1} parent=1 // pred_fallthru
      _
    // Predicated region
    $region38: #{coreset_stats.1} parent=1 // pred_check
      _
    $region39: #{coreset_stats.1} parent=1 // pred_check_branch
      %172 = sbr.rel (0) target = $region41
    $region40: #{coreset_stats.1} parent=1 // pred_region
      _
    $region41: #{coreset_stats.1} parent=1 // pred_fallthru
      _
    %173 = vsyncpa [#allocation5], 1
    %174 = vsyncpa [#allocation6], 1

</llo_original>
